<compile_context>
chip_gen: v7x
topology: tpu7x:2x2x1
jax: 0.10.0
libtpu: 0.0.40
codegen_flags: <defaults>
</compile_context>

<pallas_src>
import functools

import jax
import jax.numpy as jnp
from jax.experimental import pallas as pl
from jax.experimental.pallas import tpu as pltpu

_LANE = 128
_ACC_ROWS = 256  # fixed f32 accumulator: 256*128*4 B = 128 KiB = 32 vregs


def _round_up(x, m):
    return ((x + m - 1) // m) * m


def _sublane(dtype):
    # Sublane packing: f32 -> 8 rows, bf16/f16 -> 16, int8/fp8 -> 32.
    return max(8, 32 // jnp.dtype(dtype).itemsize)


def _tpu_defaults():
    """(tile_rows, num_shards) per TPU generation.

    v7x (2 TCs, ~3.2 TB/s HBM): 8192-row blocks + 2-way shard axis.
    v5e/v6e (1 TC): 4096-row blocks, no shard axis (a 2-way split on a 1-TC
    chip only adds duplicate clamped DMAs and extra init/finalize work).
    """
    try:
        kind = jax.devices()[0].device_kind.lower()
    except Exception:
        kind = ""
    if "v7" in kind or "7x" in kind:
        return 8192, 2
    return 4096, 1


def _mse_partial_kernel(p_ref, t_ref, o_ref, acc_ref, *,
                        tile_rows, acc_rows, steps_per_shard, n_rows,
                        need_mask):
    c = pl.program_id(0)   # shard axis ("parallel"; 2-way only on v7x)
    i = pl.program_id(1)   # reduction steps within the shard ("arbitrary")

    @pl.when(i == 0)
    def _init():
        acc_ref[...] = jnp.zeros_like(acc_ref)

    # Cast to f32 exactly once (matches torch's .float()); subtract/square in
    # f32 (cheapest path on v5e too, which has no bf16 VPU).
    d = p_ref[...].astype(jnp.float32) - t_ref[...].astype(jnp.float32)
    sq = d * d

    def _fold(x):
        # Fold the (tile_rows, 128) slab into the fixed (acc_rows, 128)
        # accumulator.  tile_rows % acc_rows == 0 by construction; the reshape
        # only splits the sublane dim on an (8,128) tile boundary, so it is a
        # free re-indexing (no data movement), and the axis-0 sum is plain
        # vector adds over >= 32 independent vregs.
        acc_ref[...] += x.reshape(-1, acc_rows, _LANE).sum(axis=0)

    if need_mask:
        blk = c * steps_per_shard + i
        row0 = blk * tile_rows
        # Only the edge block (and clamped overhang shard slots) pay for the
        # iota/compare/select; every full block stays on the pure VPU path.
        is_partial = row0 + tile_rows > n_rows

        @pl.when(jnp.logical_not(is_partial))
        def _full():
            _fold(sq)

        @pl.when(is_partial)
        def _masked():
            # Index-based mask: garbage from the partially-OOB edge read (or a
            # clamped overhang shard slot) never leaks into the sum.
            row_idx = jax.lax.broadcasted_iota(jnp.int32, sq.shape, 0) + row0
            _fold(jnp.where(row_idx < n_rows, sq, 0.0))
    else:
        _fold(sq)

    @pl.when(i == pl.num_programs(1) - 1)
    def _finalize():
        # One small cross-sublane reduce per shard; the remaining
        # (num_shards, 128) values are summed in the wrapper.
        o_ref[...] = jnp.sum(acc_ref[...], axis=0, keepdims=True)[None]


def _mse_partial_sum(p2, t2, rows, tile_rows, num_shards):
    """Sum of squared differences over matching (rows, 128) arrays."""
    sub = max(_sublane(p2.dtype), _sublane(t2.dtype))

    rows_per_shard = pl.cdiv(rows, num_shards)
    tile = min(tile_rows, _round_up(rows_per_shard, sub))
    if tile > _ACC_ROWS:
        acc_rows = _ACC_ROWS
        tile = _round_up(tile, acc_rows)   # keep tile % acc_rows == 0
    else:
        acc_rows = tile

    total_blocks = pl.cdiv(rows, tile)
    steps = pl.cdiv(total_blocks, num_shards)
    need_mask = num_shards * steps * tile > rows
    last_block = total_blocks - 1

    def in_map(c, i):
        # Clamp so overhanging grid slots re-read the last real block; their
        # rows are fully masked inside the kernel, so no fully-OOB DMA occurs.
        return (jnp.minimum(c * steps + i, last_block), 0)

    kernel = functools.partial(
        _mse_partial_kernel,
        tile_rows=tile,
        acc_rows=acc_rows,
        steps_per_shard=steps,
        n_rows=rows,
        need_mask=need_mask,
    )

    partials = pl.pallas_call(
        kernel,
        out_shape=jax.ShapeDtypeStruct((num_shards, 1, _LANE), jnp.float32),
        grid_spec=pltpu.PrefetchScalarGridSpec(
            num_scalar_prefetch=0,
            grid=(num_shards, steps),
            in_specs=[
                pl.BlockSpec((tile, _LANE), in_map),
                pl.BlockSpec((tile, _LANE), in_map),
            ],
            out_specs=pl.BlockSpec((1, 1, _LANE), lambda c, i: (c, 0, 0)),
            scratch_shapes=[pltpu.VMEM((acc_rows, _LANE), jnp.float32)],
        ),
        # TODO(synk): on v7x, verify in an xprof trace that the leading
        # "parallel" axis really shards across both TensorCores; escalate to
        # pltpu.CORE_PARALLEL / pl.core_map if it does not.
        compiler_params=pltpu.CompilerParams(
            dimension_semantics=("parallel", "arbitrary"),
        ),
    )(p2, t2)

    return jnp.sum(partials)


def mse_loss(pred, true, *, tile_rows=None, num_shards=None):
    """Equivalent of nn.MSELoss()(pred.float(), true.float()) -> scalar f32."""
    assert pred.shape == true.shape, "MSELoss requires matching shapes"
    n_elems = int(pred.size)
    assert n_elems > 0

    if tile_rows is None or num_shards is None:
        d_tile, d_shards = _tpu_defaults()
        tile_rows = d_tile if tile_rows is None else tile_rows
        num_shards = d_shards if num_shards is None else num_shards

    p = jnp.ravel(pred)
    t = jnp.ravel(true)

    # Lane-aligned prefix goes through the kernel (free reshape, no pad copy);
    # the <128-element ragged remainder (if any) is summed in the wrapper.
    main = (n_elems // _LANE) * _LANE
    rows = main // _LANE

    total = jnp.float32(0.0)
    if rows > 0:
        if main == n_elems:
            p_main, t_main = p, t            # common case: zero copies
        else:
            # NOTE: a prefix slice of a ragged input may materialize one copy
            # per input; the lane-aligned path is unaffected.
            p_main, t_main = p[:main], t[:main]
        total = total + _mse_partial_sum(
            p_main.reshape(rows, _LANE), t_main.reshape(rows, _LANE),
            rows, tile_rows, num_shards)
    if main != n_elems:
        d_tail = p[main:].astype(jnp.float32) - t[main:].astype(jnp.float32)
        total = total + jnp.sum(d_tail * d_tail)

    return (total / jnp.float32(n_elems)).astype(jnp.float32)


if __name__ == "__main__":
    key = jax.random.PRNGKey(0)
    k1, k2, k3, k4 = jax.random.split(key, 4)

    # Small NCHW shapes consistent with the module's usage.
    pred = jax.random.normal(k1, (2, 4, 16, 16), dtype=jnp.float32)
    true = jax.random.normal(k2, (2, 4, 16, 16), dtype=jnp.float32)

    out = mse_loss(pred, true)
    jax.block_until_ready(out)

    ref = jnp.mean((pred.astype(jnp.float32) - true.astype(jnp.float32)) ** 2)
    assert jnp.allclose(out, ref, rtol=1e-5, atol=1e-6), (out, ref)

    # Extra check exercising the non-multiple-of-128 path (kernel on the
    # lane-aligned prefix + wrapper tail + gated in-kernel edge mask).
    p_odd = jax.random.normal(k3, (1000,), dtype=jnp.float32)
    t_odd = jax.random.normal(k4, (1000,), dtype=jnp.float32)
    out_odd = mse_loss(p_odd, t_odd)
    jax.block_until_ready(out_odd)
    ref_odd = jnp.mean((p_odd - t_odd) ** 2)
    assert jnp.allclose(out_odd, ref_odd, rtol=1e-5, atol=1e-6), (out_odd, ref_odd)

    print("KERNEL_OK")
</pallas_src>

<mosaic_0001>
module attributes {stable_mosaic.version = 11 : i64} {
  func.func @_mse_partial_kernel(%arg0: i32, %arg1: i32, %arg2: memref<16x128xf32, #tpu.memory_space<vmem>>, %arg3: memref<16x128xf32, #tpu.memory_space<vmem>>, %arg4: memref<1x1x128xf32, #tpu.memory_space<vmem>>, %arg5: memref<16x128xf32, #tpu.memory_space<vmem>>) attributes {dimension_semantics = [#tpu.dimension_semantics<parallel>, #tpu.dimension_semantics<arbitrary>], iteration_bounds = array<i64: 1, 1>, scalar_prefetch = 0 : i64, scratch_operands = 1 : i64, tpu.core_type = #tpu.core_type<tc>, window_params = [{transform_indices = @transform_0, window_bounds = array<i64: 16, 128>}, {transform_indices = @transform_1, window_bounds = array<i64: 16, 128>}, {transform_indices = @transform_2, window_bounds = array<i64: 1, 1, 128>}]} {
    %c0_i32 = arith.constant 0 : i32
    %0 = arith.cmpi eq, %arg1, %c0_i32 : i32
    %1 = arith.extui %0 : i1 to i32
    %c0_i32_0 = arith.constant 0 : i32
    %2 = arith.cmpi ne, %1, %c0_i32_0 : i32
    scf.if %2 {
      %cst_10 = arith.constant 0.000000e+00 : f32
      %15 = vector.broadcast %cst_10 : f32 to vector<16x128xf32>
      %c0_11 = arith.constant 0 : index
      %c0_12 = arith.constant 0 : index
      %16 = vector.load %arg5[%c0_11, %c0_12] : memref<16x128xf32, #tpu.memory_space<vmem>>, vector<16x128xf32>
      tpu.vector_store %arg5[%c0_11, %c0_12], %15 {strides = array<i32>} : memref<16x128xf32, #tpu.memory_space<vmem>>, vector<16x128xf32>,
    } else {
    }
    %c0 = arith.constant 0 : index
    %c0_1 = arith.constant 0 : index
    %3 = vector.load %arg2[%c0, %c0_1] : memref<16x128xf32, #tpu.memory_space<vmem>>, vector<16x128xf32>
    %c0_2 = arith.constant 0 : index
    %c0_3 = arith.constant 0 : index
    %4 = vector.load %arg3[%c0_2, %c0_3] : memref<16x128xf32, #tpu.memory_space<vmem>>, vector<16x128xf32>
    %5 = arith.subf %3, %4 : vector<16x128xf32>
    %6 = arith.mulf %5, %5 : vector<16x128xf32>
    %c0_4 = arith.constant 0 : index
    %c0_5 = arith.constant 0 : index
    %7 = vector.load %arg5[%c0_4, %c0_5] : memref<16x128xf32, #tpu.memory_space<vmem>>, vector<16x128xf32>
    %8 = vector.shape_cast %6 : vector<16x128xf32> to vector<1x16x128xf32>
    %cst = arith.constant dense<0.000000e+00> : vector<16x128xf32>
    %9 = vector.multi_reduction <add>, %8, %cst [0] : vector<1x16x128xf32> to vector<16x128xf32>
    %10 = arith.addf %7, %9 : vector<16x128xf32>
    %c0_6 = arith.constant 0 : index
    %c0_7 = arith.constant 0 : index
    %11 = vector.load %arg5[%c0_6, %c0_7] : memref<16x128xf32, #tpu.memory_space<vmem>>, vector<16x128xf32>
    tpu.vector_store %arg5[%c0_6, %c0_7], %10 {strides = array<i32>} : memref<16x128xf32, #tpu.memory_space<vmem>>, vector<16x128xf32>,
    %c0_i32_8 = arith.constant 0 : i32
    %12 = arith.cmpi eq, %arg1, %c0_i32_8 : i32
    %13 = arith.extui %12 : i1 to i32
    %c0_i32_9 = arith.constant 0 : i32
    %14 = arith.cmpi ne, %13, %c0_i32_9 : i32
    scf.if %14 {
      %c0_10 = arith.constant 0 : index
      %c0_11 = arith.constant 0 : index
      %15 = vector.load %arg5[%c0_10, %c0_11] : memref<16x128xf32, #tpu.memory_space<vmem>>, vector<16x128xf32>
      %cst_12 = arith.constant dense<0.000000e+00> : vector<128xf32>
      %16 = vector.multi_reduction <add>, %15, %cst_12 [0] : vector<16x128xf32> to vector<128xf32>
      %17 = vector.shape_cast %16 : vector<128xf32> to vector<1x128xf32>
      %18 = vector.shape_cast %17 : vector<1x128xf32> to vector<1x1x128xf32>
      %c0_13 = arith.constant 0 : index
      %c0_14 = arith.constant 0 : index
      %c0_15 = arith.constant 0 : index
      %19 = vector.load %arg4[%c0_13, %c0_14, %c0_15] : memref<1x1x128xf32, #tpu.memory_space<vmem>>, vector<1x1x128xf32>
      tpu.vector_store %arg4[%c0_13, %c0_14, %c0_15], %18 {strides = array<i32>} : memref<1x1x128xf32, #tpu.memory_space<vmem>>, vector<1x1x128xf32>,
    } else {
    }
    return
  }
  func.func @transform_0(%arg0: i32, %arg1: i32) -> (i32, i32) {
    %c1_i32 = arith.constant 1 : i32
    %0 = arith.muli %arg0, %c1_i32 : i32
    %1 = arith.addi %0, %arg1 : i32
    %c0_i32 = arith.constant 0 : i32
    %2 = arith.minsi %1, %c0_i32 : i32
    %c0_i32_0 = arith.constant 0 : i32
    %c0_i32_1 = arith.constant 0 : i32
    return %2, %c0_i32_0 : i32, i32
  }
  func.func @transform_1(%arg0: i32, %arg1: i32) -> (i32, i32) {
    %c1_i32 = arith.constant 1 : i32
    %0 = arith.muli %arg0, %c1_i32 : i32
    %1 = arith.addi %0, %arg1 : i32
    %c0_i32 = arith.constant 0 : i32
    %2 = arith.minsi %1, %c0_i32 : i32
    %c0_i32_0 = arith.constant 0 : i32
    %c0_i32_1 = arith.constant 0 : i32
    return %2, %c0_i32_0 : i32, i32
  }
  func.func @transform_2(%arg0: i32, %arg1: i32) -> (i32, i32, i32) {
    %c0_i32 = arith.constant 0 : i32
    %c0_i32_0 = arith.constant 0 : i32
    %c0_i32_1 = arith.constant 0 : i32
    return %arg0, %c0_i32, %c0_i32_0 : i32, i32, i32
  }
}

</mosaic_0001>

<llo_original>
// kernel: tpu_custom_call.1
$region0: #{tpu_custom_call.1}
  #allocation0 [shape = 'u32[]', space=smem, size = 0x4, offset = 0x4, fixed_abs, tag = 'smem constant byte address 0x4 - core index']
  #allocation1 [shape = 'u32[144,128]{1,0:T(1,128)}', space=vmem, size = 0x12000, scoped, tag = 'internal scratch']
  #allocation2 [shape = 'f32[16,128]{1,0:T(8,128)}', space=vmem, size = 0x2000, scoped, tag = 'scratch operand']
  %s0 = inlined_call_operand.hbm [shape: f32[16,128], index: 0, kind: input, shape index: {}]
  %s1 = inlined_call_operand.hbm [shape: f32[16,128], index: 1, kind: input, shape index: {}]
  %s2 = inlined_call_operand.hbm [shape: f32[1,1,128], index: 2, kind: output, shape index: {}]
  %s3 = sld [smem:[#allocation0]]
  $region34: #{tpu_custom_call.1} parent=0
    _
  %s5 = ssub.s32 1, %s3
  %s6 = scalar_select 0, %s5, %s3
  $region1: #{tpu_custom_call.1} parent=0
    #allocation3 [shape = 'u8[8192]{0}', space=vmem, size = 0x2000, scoped, tag = 'input window, operand 0, single buffered']
    #allocation4 [shape = 's32[1]{0}', space=sflag, size = 0x4, scoped, tag = 'scoped memory for tpu_custom_call.1']
    #allocation5 [shape = 's32[1]{0}', space=sflag, size = 0x4, scoped, tag = 'scoped memory for tpu_custom_call.1']
    #allocation6 [shape = 'u8[8192]{0}', space=vmem, size = 0x2000, scoped, tag = 'input window, operand 1, single buffered']
    #allocation7 [shape = 's32[1]{0}', space=sflag, size = 0x4, scoped, tag = 'scoped memory for tpu_custom_call.1']
    #allocation8 [shape = 'u8[512]{0}', space=vmem, size = 0x400, scoped, tag = 'output window, operand 0, single buffered']
    %7 = vsyncpa [#allocation4], 0
    %8 = vsyncpa [#allocation7], 0
    %9 = vsyncpa [#allocation5], 0
    // Predicated region
    $region2: #{tpu_custom_call.1} parent=1 // pred_check
      _
    $region3: #{tpu_custom_call.1} parent=1 // pred_check_branch
      %11 = sbr.rel (0) target = $region5
    $region4: #{tpu_custom_call.1} parent=1 // pred_region
      %s12 = sadd.s32 0, 0
      %p13 = scmp.lt.s32.totalorder %s12, 0
      %s14 = scalar_select %p13, %s12, 0
      %s15 = smul.u32 2, %s14
      %s17 = ssub.s32 256, 256
      %18 = vsyncadd [#allocation4], %s17
      %s19 = smul.addr %s15, 128
      %s20 = scalar_lea.hbm %s0, %s19
      %s21 = sshll.u32 [#allocation3], 4
      %s22 = int_to_ptr.vmem [resolvable:$true] %s21
      %27 = dma.hbm_to_vmem [thread:$0]  %s20, 256, %s22, [#allocation4], 128, 128, 8
    $region5: #{tpu_custom_call.1} parent=1 // pred_fallthru
      _
    // Predicated region
    $region6: #{tpu_custom_call.1} parent=1 // pred_check
      _
    $region7: #{tpu_custom_call.1} parent=1 // pred_check_branch
      %29 = sbr.rel (0) target = $region9
    $region8: #{tpu_custom_call.1} parent=1 // pred_region
      %s30 = sadd.s32 0, 0
      %p31 = scmp.lt.s32.totalorder %s30, 0
      %s32 = scalar_select %p31, %s30, 0
      %s33 = smul.u32 2, %s32
      %s35 = ssub.s32 256, 256
      %36 = vsyncadd [#allocation7], %s35
      %s37 = smul.addr %s33, 128
      %s38 = scalar_lea.hbm %s1, %s37
      %s39 = sshll.u32 [#allocation6], 4
      %s40 = int_to_ptr.vmem [resolvable:$true] %s39
      %45 = dma.hbm_to_vmem [thread:$0]  %s38, 256, %s40, [#allocation7], 128, 128, 8
    $region9: #{tpu_custom_call.1} parent=1 // pred_fallthru
      _
    // Predicated region
    $region10: #{tpu_custom_call.1} parent=1 // pred_check
      _
    $region11: #{tpu_custom_call.1} parent=1 // pred_check_branch
      %47 = sbr.rel (0) target = $region13
    $region12: #{tpu_custom_call.1} parent=1 // pred_region
      %48 = dma.done [#allocation4], 256
    $region13: #{tpu_custom_call.1} parent=1 // pred_fallthru
      _
    // Predicated region
    $region14: #{tpu_custom_call.1} parent=1 // pred_check
      _
    $region15: #{tpu_custom_call.1} parent=1 // pred_check_branch
      %50 = sbr.rel (0) target = $region17
    $region16: #{tpu_custom_call.1} parent=1 // pred_region
      %51 = dma.done [#allocation7], 256
    $region17: #{tpu_custom_call.1} parent=1 // pred_fallthru
      _
    %s52 = sadd.s32 0, 0
    %p53 = scmp.lt.s32.totalorder %s52, 0
    %s54 = scalar_select %p53, %s52, 0
    %s55 = smul.u32 2, %s54
    %s56 = sadd.s32 0, 0
    %p57 = scmp.lt.s32.totalorder %s56, 0
    %s58 = scalar_select %p57, %s56, 0
    %s59 = smul.u32 2, %s58
    %p60 = scmp.eq.s32.totalorder 0, 0
    // Predicated region
    $region18: #{tpu_custom_call.1} parent=1 // pred_check
      %p61 = pneg %p60
    $region19: #{tpu_custom_call.1} parent=1 // pred_check_branch
      %63 = sbr.rel (%p61) target = $region21
    $region20: #{tpu_custom_call.1} parent=1 // pred_region
      %64 = vst [vmem:[#allocation2] sm:$0xff] 0.0
      %65 = vst [vmem:[#allocation2 + $0x8] sm:$0xff] 0.0
    $region21: #{tpu_custom_call.1} parent=1 // pred_fallthru
      _
    %v66 = vld [vmem:[#allocation3] sm:$0xff]
    %v67 = vld [vmem:[#allocation3 + $0x8] sm:$0xff]
    %v68 = vld [vmem:[#allocation6] sm:$0xff]
    %v69 = vld [vmem:[#allocation6 + $0x8] sm:$0xff]
    %v70 = vsub.f32 %v66, %v68
    %v71 = vsub.f32 %v67, %v69
    %v72 = vmul.f32 %v70, %v70
    %v73 = vmul.f32 %v71, %v71
    %v74 = vld [vmem:[#allocation2] sm:$0xff]
    %v75 = vld [vmem:[#allocation2 + $0x8] sm:$0xff]
    %v76 = vadd.f32 %v72, 0.0
    %v77 = vadd.f32 %v73, 0.0
    %v78 = vadd.f32 %v74, %v76
    %v79 = vadd.f32 %v75, %v77
    %80 = vst [vmem:[#allocation2] sm:$0xff] %v78
    %81 = vst [vmem:[#allocation2 + $0x8] sm:$0xff] %v79
    // Predicated region
    $region22: #{tpu_custom_call.1} parent=1 // pred_check
      %p82 = pneg %p60
    $region23: #{tpu_custom_call.1} parent=1 // pred_check_branch
      %84 = sbr.rel (%p82) target = $region25
    $region24: #{tpu_custom_call.1} parent=1 // pred_region
      %v85 = vld [vmem:[#allocation2] sm:$0xff]
      %v86 = vld [vmem:[#allocation2 + $0x8] sm:$0xff]
      %v87 = vadd.f32 %v85, %v86
      %v88 = vrot.slane %v87, 4
      %v89 = vadd.f32 %v87, %v88
      %v90 = vrot.slane %v89, 2
      %v91 = vadd.f32 %v89, %v90
      %v92 = vrot.slane %v91, 1
      %v93 = vadd.f32 %v91, %v92
      %94 = vst [vmem:[#allocation8] sm:$0x1] %v93
    $region25: #{tpu_custom_call.1} parent=1 // pred_fallthru
      _
    // Predicated region
    $region26: #{tpu_custom_call.1} parent=1 // pred_check
      _
    $region27: #{tpu_custom_call.1} parent=1 // pred_check_branch
      %96 = sbr.rel (0) target = $region29
    $region28: #{tpu_custom_call.1} parent=1 // pred_region
      %s98 = ssub.s32 16, 16
      %99 = vsyncadd [#allocation5], %s98
      %s101 = sshll.u32 [#allocation8], 4
      %s102 = int_to_ptr.vmem [resolvable:$true] %s101
      %104 = dma.vmem_to_hbm [thread:$0]  %s102, 16, %s2, [#allocation5]
    $region29: #{tpu_custom_call.1} parent=1 // pred_fallthru
      _
    // Predicated region
    $region30: #{tpu_custom_call.1} parent=1 // pred_check
      _
    $region31: #{tpu_custom_call.1} parent=1 // pred_check_branch
      %106 = sbr.rel (0) target = $region33
    $region32: #{tpu_custom_call.1} parent=1 // pred_region
      %107 = dma.done [#allocation5], 16
    $region33: #{tpu_custom_call.1} parent=1 // pred_fallthru
      _
    %108 = vsyncpa [#allocation4], 1
    %109 = vsyncpa [#allocation7], 1
    %110 = vsyncpa [#allocation5], 1

</llo_original>
